<compile_context>
chip_gen: v7x
topology: tpu7x:2x2x1
jax: 0.10.0
libtpu: 0.0.40
codegen_flags: <defaults>
</compile_context>

<pallas_src>
import functools

import jax
import jax.numpy as jnp
from jax.experimental import pallas as pl
from jax.experimental.pallas import tpu as pltpu


# Scoped-VMEM budget: comfortably inside v7x's 64 MiB physical VMEM and above the
# 16/32 MiB scoped defaults on v5e / v6e-v7x, so larger tiles keep 2-deep buffering.
_VMEM_LIMIT_BYTES = 48 * 1024 * 1024


def _pick_tile(dim, target):
    """Use `target` if it evenly tiles `dim`, else fall back to the full extent."""
    return target if dim % target == 0 else dim


# ---------------------------------------------------------------------------
# Tiled linear (GEMM) kernels
# ---------------------------------------------------------------------------

def _linear_kernel(x_ref, w_ref, o_ref, acc_ref):
    # x: (tm, tk), w: (tk, tn) -> o: (tm, tn); f32 accumulator over the K grid axis.
    k = pl.program_id(2)

    @pl.when(k == 0)
    def _():
        acc_ref[...] = jnp.zeros_like(acc_ref)

    acc_ref[...] += jnp.dot(x_ref[...], w_ref[...],
                            preferred_element_type=jnp.float32)

    @pl.when(k == pl.num_programs(2) - 1)
    def _():
        o_ref[...] = acc_ref[...].astype(o_ref.dtype)


def _linear_bias_kernel(x_ref, w_ref, b_ref, o_ref, acc_ref):
    # Same as above; bias (1, tn) is only touched in the finalize branch
    # (kept off the K-reduction hot path).
    k = pl.program_id(2)

    @pl.when(k == 0)
    def _():
        acc_ref[...] = jnp.zeros_like(acc_ref)

    acc_ref[...] += jnp.dot(x_ref[...], w_ref[...],
                            preferred_element_type=jnp.float32)

    @pl.when(k == pl.num_programs(2) - 1)
    def _():
        o_ref[...] = (acc_ref[...] + b_ref[...]).astype(o_ref.dtype)


def _pallas_linear(x2d, w, b=None, *, tm=256, tn=256, tk=512):
    M, K = x2d.shape
    K2, N = w.shape
    if K != K2:
        raise ValueError(
            f"input feature dim {K} does not match weight input dim {K2} "
            f"(self-attention with cond=None requires d_cond == d_model)")

    tm = _pick_tile(M, tm)
    tn = _pick_tile(N, tn)
    tk = _pick_tile(K, tk)
    grid = (M // tm, N // tn, K // tk)

    x_spec = pl.BlockSpec((tm, tk), lambda i, j, k: (i, k))
    w_spec = pl.BlockSpec((tk, tn), lambda i, j, k: (k, j))
    o_spec = pl.BlockSpec((tm, tn), lambda i, j, k: (i, j))
    scratch = [pltpu.VMEM((tm, tn), jnp.float32)]
    cparams = pltpu.CompilerParams(
        dimension_semantics=("parallel", "parallel", "arbitrary"),
        vmem_limit_bytes=_VMEM_LIMIT_BYTES,
    )
    out_shape = jax.ShapeDtypeStruct((M, N), x2d.dtype)

    if b is None:
        return pl.pallas_call(
            _linear_kernel,
            out_shape=out_shape,
            grid_spec=pltpu.PrefetchScalarGridSpec(
                num_scalar_prefetch=0, grid=grid,
                in_specs=[x_spec, w_spec], out_specs=o_spec,
                scratch_shapes=scratch),
            compiler_params=cparams,
        )(x2d, w)

    b2d = b.reshape(1, N)
    b_spec = pl.BlockSpec((1, tn), lambda i, j, k: (0, j))
    return pl.pallas_call(
        _linear_bias_kernel,
        out_shape=out_shape,
        grid_spec=pltpu.PrefetchScalarGridSpec(
            num_scalar_prefetch=0, grid=grid,
            in_specs=[x_spec, w_spec, b_spec], out_specs=o_spec,
            scratch_shapes=scratch),
        compiler_params=cparams,
    )(x2d, w, b2d)


# ---------------------------------------------------------------------------
# Flash-style multi-head attention kernel (online softmax, heads kept packed)
# ---------------------------------------------------------------------------

def _flash_attn_kernel(q_ref, k_ref, v_ref, o_ref, m_sc, l_sc, acc_sc, *,
                       n_heads, d_head, scale):
    # q: (1, tq, H*Dh), k/v: (1, tk, H*Dh) -> o: (1, tq, H*Dh)
    # Grid axis 2 runs over KV tiles ("arbitrary"); m/l/acc carry the online softmax.
    ki = pl.program_id(2)

    @pl.when(ki == 0)
    def _():
        m_sc[...] = jnp.full_like(m_sc, -jnp.inf)
        l_sc[...] = jnp.zeros_like(l_sc)
        acc_sc[...] = jnp.zeros_like(acc_sc)

    tq = q_ref.shape[1]
    tk = k_ref.shape[1]

    # Fold the softmax scale into q: tq*Dh multiplies instead of tq*tk on the scores.
    q = q_ref[0].reshape(tq, n_heads, d_head) * scale
    k = k_ref[0].reshape(tk, n_heads, d_head)
    v = v_ref[0].reshape(tk, n_heads, d_head)

    # Per-head scores with heads as the dot_general batch dim: (H, tq, tk).
    # (No explicit k.T — the contraction is expressed directly.)
    s = jnp.einsum("qhd,khd->hqk", q, k, preferred_element_type=jnp.float32)

    m_prev = m_sc[...]                                           # (H, tq, 1)
    m_new = jnp.maximum(m_prev, jnp.max(s, axis=-1, keepdims=True))
    alpha = jnp.exp(m_prev - m_new)
    p = jnp.exp(s - m_new)                                       # (H, tq, tk)
    l_sc[...] = alpha * l_sc[...] + jnp.sum(p, axis=-1, keepdims=True)

    pv = jnp.einsum("hqk,khd->hqd", p.astype(v.dtype), v,
                    preferred_element_type=jnp.float32)          # (H, tq, Dh)
    acc_sc[...] = alpha * acc_sc[...] + pv
    m_sc[...] = m_new

    @pl.when(ki == pl.num_programs(2) - 1)
    def _():
        inv_l = pl.reciprocal(l_sc[...], approx=True)            # EUP slot
        out = acc_sc[...] * inv_l                                # (H, tq, Dh)
        # Single per-q-tile merge back to the lane-dense (tq, H*Dh) output layout.
        out = jnp.transpose(out, (1, 0, 2)).reshape(tq, n_heads * d_head)
        o_ref[0] = out.astype(o_ref.dtype)


def _pallas_flash_attention(q, k, v, n_heads, d_head, scale, *, tq=128, tk=128):
    # q: (B, Sq, H*Dh), k/v: (B, Sk, H*Dh) — no head-split transposes in HBM.
    B, Sq, d_attn = q.shape
    Sk = k.shape[1]
    tq = _pick_tile(Sq, tq)
    tk = _pick_tile(Sk, tk)
    grid = (B, Sq // tq, Sk // tk)

    kernel = functools.partial(
        _flash_attn_kernel, n_heads=n_heads, d_head=d_head, scale=scale)

    return pl.pallas_call(
        kernel,
        out_shape=jax.ShapeDtypeStruct((B, Sq, d_attn), q.dtype),
        grid_spec=pltpu.PrefetchScalarGridSpec(
            num_scalar_prefetch=0,
            grid=grid,
            in_specs=[
                pl.BlockSpec((1, tq, d_attn), lambda b, qi, ki: (b, qi, 0)),
                pl.BlockSpec((1, tk, d_attn), lambda b, qi, ki: (b, ki, 0)),
                pl.BlockSpec((1, tk, d_attn), lambda b, qi, ki: (b, ki, 0)),
            ],
            out_specs=pl.BlockSpec((1, tq, d_attn), lambda b, qi, ki: (b, qi, 0)),
            scratch_shapes=[
                pltpu.VMEM((n_heads, tq, 1), jnp.float32),       # running max
                pltpu.VMEM((n_heads, tq, 1), jnp.float32),       # running denom
                pltpu.VMEM((n_heads, tq, d_head), jnp.float32),  # output accumulator
            ],
        ),
        compiler_params=pltpu.CompilerParams(
            dimension_semantics=("parallel", "parallel", "arbitrary"),
            vmem_limit_bytes=_VMEM_LIMIT_BYTES,
        ),
    )(q, k, v)


# ---------------------------------------------------------------------------
# Module
# ---------------------------------------------------------------------------

class CrossAttentionPallas:
    """JAX/Pallas re-implementation of the PyTorch CrossAttention module."""

    def __init__(self, d_model, d_cond, n_heads, d_head, key):
        self.n_heads = n_heads
        self.d_head = d_head
        self.d_model = d_model
        self.d_cond = d_cond
        self.scale = d_head ** (-0.5)
        d_attn = n_heads * d_head
        k1, k2, k3, k4, k5 = jax.random.split(key, 5)
        # Weights stored as (in_features, out_features) so y = x @ W (+ b).
        init = lambda k, fan_in, shape: (
            jax.random.uniform(k, shape, jnp.float32, -1.0, 1.0) / jnp.sqrt(fan_in)
        )
        self.w_q = init(k1, d_model, (d_model, d_attn))
        self.w_k = init(k2, d_cond, (d_cond, d_attn))
        self.w_v = init(k3, d_cond, (d_cond, d_attn))
        self.w_o = init(k4, d_attn, (d_attn, d_model))
        self.b_o = init(k5, d_attn, (d_model,))
        # Fused projection weights: cond is read once for K+V; for the
        # self-attention path (d_model == d_cond) Q/K/V become one GEMM.
        self.w_kv = jnp.concatenate([self.w_k, self.w_v], axis=1)
        self.w_qkv = (jnp.concatenate([self.w_q, self.w_k, self.w_v], axis=1)
                      if d_model == d_cond else None)

    def __call__(self, x, cond=None):
        # x: (B, Sq, d_model), cond: (B, Sk, d_cond) or None
        B, Sq, d_model = x.shape
        d_attn = self.n_heads * self.d_head

        if cond is None:
            # Self-attention fallback — valid only when d_cond == d_model
            # (same constraint as the PyTorch module).
            if self.w_qkv is None:
                raise ValueError(
                    "cond=None (self-attention) requires d_cond == d_model")
            Sk = Sq
            qkv = _pallas_linear(x.reshape(B * Sq, d_model), self.w_qkv)
            q = qkv[:, :d_attn].reshape(B, Sq, d_attn)
            k = qkv[:, d_attn:2 * d_attn].reshape(B, Sk, d_attn)
            v = qkv[:, 2 * d_attn:].reshape(B, Sk, d_attn)
        else:
            Sk = cond.shape[1]
            q = _pallas_linear(
                x.reshape(B * Sq, d_model), self.w_q).reshape(B, Sq, d_attn)
            kv = _pallas_linear(cond.reshape(B * Sk, -1), self.w_kv)
            k = kv[:, :d_attn].reshape(B, Sk, d_attn)
            v = kv[:, d_attn:].reshape(B, Sk, d_attn)

        attn_out = _pallas_flash_attention(
            q, k, v, self.n_heads, self.d_head, self.scale)

        out = _pallas_linear(
            attn_out.reshape(B * Sq, d_attn), self.w_o, self.b_o)
        return out.reshape(B, Sq, d_model)


# ---------------------------------------------------------------------------
# Pure-JAX reference (mirrors the PyTorch forward) for a correctness check.
# ---------------------------------------------------------------------------

def _reference(mod, x, cond=None):
    if cond is None:
        cond = x
    q = x @ mod.w_q
    k = cond @ mod.w_k
    v = cond @ mod.w_v
    B, Sq, _ = q.shape
    Sk = k.shape[1]
    q = q.reshape(B, Sq, mod.n_heads, mod.d_head)
    k = k.reshape(B, Sk, mod.n_heads, mod.d_head)
    v = v.reshape(B, Sk, mod.n_heads, mod.d_head)
    attn = jnp.einsum("bihd,bjhd->bhij", q, k) * mod.scale
    attn = jax.nn.softmax(attn, axis=-1)
    out = jnp.einsum("bhij,bjhd->bihd", attn, v)
    out = out.reshape(B, Sq, mod.n_heads * mod.d_head)
    return out @ mod.w_o + mod.b_o


# ---------------------------------------------------------------------------

if __name__ == "__main__":
    key = jax.random.PRNGKey(0)
    k_p1, k_p2, k_x, k_cond = jax.random.split(key, 4)

    # Small shapes consistent with the module's forward.
    B = 2          # batch
    Sq = 16        # query sequence length (e.g. flattened spatial)
    Sk = 8         # conditioning sequence length
    d_model = 32
    d_cond = 16
    n_heads = 4
    d_head = 8

    x = jax.random.normal(k_x, (B, Sq, d_model), dtype=jnp.float32)
    cond = jax.random.normal(k_cond, (B, Sk, d_cond), dtype=jnp.float32)

    # Cross-attention path (d_cond != d_model).
    mod_cross = CrossAttentionPallas(d_model, d_cond, n_heads, d_head, k_p1)
    out_cross = mod_cross(x, cond)
    jax.block_until_ready(out_cross)

    # Self-attention fallback path (cond=None) — needs d_cond == d_model,
    # exactly as the PyTorch module does.
    mod_self = CrossAttentionPallas(d_model, d_model, n_heads, d_head, k_p2)
    out_self = mod_self(x, None)
    jax.block_until_ready(out_self)

    # Numerical check against a pure-JAX reference of the PyTorch forward.
    ref_cross = _reference(mod_cross, x, cond)
    ref_self = _reference(mod_self, x, None)
    assert out_cross.shape == (B, Sq, d_model)
    assert out_self.shape == (B, Sq, d_model)
    # Tolerance loosened slightly vs pure-f32 to cover pl.reciprocal(approx=True).
    assert jnp.allclose(out_cross, ref_cross, atol=2e-3, rtol=2e-3), (
        float(jnp.max(jnp.abs(out_cross - ref_cross))))
    assert jnp.allclose(out_self, ref_self, atol=2e-3, rtol=2e-3), (
        float(jnp.max(jnp.abs(out_self - ref_self))))

    print("KERNEL_OK")
</pallas_src>

<mosaic_0001>
module attributes {stable_mosaic.version = 11 : i64} {
  func.func @_linear_kernel(%arg0: i32, %arg1: i32, %arg2: i32, %arg3: memref<32x32xf32, #tpu.memory_space<vmem>>, %arg4: memref<32x32xf32, #tpu.memory_space<vmem>>, %arg5: memref<32x32xf32, #tpu.memory_space<vmem>>, %arg6: memref<32x32xf32, #tpu.memory_space<vmem>>) attributes {dimension_semantics = [#tpu.dimension_semantics<parallel>, #tpu.dimension_semantics<parallel>, #tpu.dimension_semantics<arbitrary>], iteration_bounds = array<i64: 1, 1, 1>, scalar_prefetch = 0 : i64, scratch_operands = 1 : i64, tpu.core_type = #tpu.core_type<tc>, window_params = [{transform_indices = @transform_0, window_bounds = array<i64: 32, 32>}, {transform_indices = @transform_1, window_bounds = array<i64: 32, 32>}, {transform_indices = @transform_2, window_bounds = array<i64: 32, 32>}]} {
    %c0_i32 = arith.constant 0 : i32
    %0 = arith.cmpi eq, %arg2, %c0_i32 : i32
    %1 = arith.extui %0 : i1 to i32
    %c0_i32_0 = arith.constant 0 : i32
    %2 = arith.cmpi ne, %1, %c0_i32_0 : i32
    scf.if %2 {
      %cst_10 = arith.constant 0.000000e+00 : f32
      %12 = vector.broadcast %cst_10 : f32 to vector<32x32xf32>
      %c0_11 = arith.constant 0 : index
      %c0_12 = arith.constant 0 : index
      %13 = vector.load %arg6[%c0_11, %c0_12] : memref<32x32xf32, #tpu.memory_space<vmem>>, vector<32x32xf32>
      tpu.vector_store %arg6[%c0_11, %c0_12], %12 {strides = array<i32>} : memref<32x32xf32, #tpu.memory_space<vmem>>, vector<32x32xf32>,
    } else {
    }
    %c0 = arith.constant 0 : index
    %c0_1 = arith.constant 0 : index
    %3 = vector.load %arg6[%c0, %c0_1] : memref<32x32xf32, #tpu.memory_space<vmem>>, vector<32x32xf32>
    %c0_2 = arith.constant 0 : index
    %c0_3 = arith.constant 0 : index
    %4 = vector.load %arg3[%c0_2, %c0_3] : memref<32x32xf32, #tpu.memory_space<vmem>>, vector<32x32xf32>
    %c0_4 = arith.constant 0 : index
    %c0_5 = arith.constant 0 : index
    %5 = vector.load %arg4[%c0_4, %c0_5] : memref<32x32xf32, #tpu.memory_space<vmem>>, vector<32x32xf32>
    %cst = arith.constant dense<0.000000e+00> : vector<32x32xf32>
    %6 = tpu.matmul %4, %5, %cst {dimension_numbers = #tpu.dot_dimension_numbers<[1], [0], [0], [1], [0, 0, 1, 1], [], []>} : vector<32x32xf32>, vector<32x32xf32>, vector<32x32xf32> -> vector<32x32xf32>
    %7 = arith.addf %3, %6 : vector<32x32xf32>
    %c0_6 = arith.constant 0 : index
    %c0_7 = arith.constant 0 : index
    %8 = vector.load %arg6[%c0_6, %c0_7] : memref<32x32xf32, #tpu.memory_space<vmem>>, vector<32x32xf32>
    tpu.vector_store %arg6[%c0_6, %c0_7], %7 {strides = array<i32>} : memref<32x32xf32, #tpu.memory_space<vmem>>, vector<32x32xf32>,
    %c0_i32_8 = arith.constant 0 : i32
    %9 = arith.cmpi eq, %arg2, %c0_i32_8 : i32
    %10 = arith.extui %9 : i1 to i32
    %c0_i32_9 = arith.constant 0 : i32
    %11 = arith.cmpi ne, %10, %c0_i32_9 : i32
    scf.if %11 {
      %c0_10 = arith.constant 0 : index
      %c0_11 = arith.constant 0 : index
      %12 = vector.load %arg6[%c0_10, %c0_11] : memref<32x32xf32, #tpu.memory_space<vmem>>, vector<32x32xf32>
      %c0_12 = arith.constant 0 : index
      %c0_13 = arith.constant 0 : index
      %13 = vector.load %arg5[%c0_12, %c0_13] : memref<32x32xf32, #tpu.memory_space<vmem>>, vector<32x32xf32>
      tpu.vector_store %arg5[%c0_12, %c0_13], %12 {strides = array<i32>} : memref<32x32xf32, #tpu.memory_space<vmem>>, vector<32x32xf32>,
    } else {
    }
    return
  }
  func.func @transform_0(%arg0: i32, %arg1: i32, %arg2: i32) -> (i32, i32) {
    %c0_i32 = arith.constant 0 : i32
    return %arg0, %arg2 : i32, i32
  }
  func.func @transform_1(%arg0: i32, %arg1: i32, %arg2: i32) -> (i32, i32) {
    %c0_i32 = arith.constant 0 : i32
    return %arg2, %arg1 : i32, i32
  }
  func.func @transform_2(%arg0: i32, %arg1: i32, %arg2: i32) -> (i32, i32) {
    %c0_i32 = arith.constant 0 : i32
    return %arg0, %arg1 : i32, i32
  }
}

</mosaic_0001>

<llo_original>
// kernel: tpu_custom_call.1
$region0: #{tpu_custom_call.1}
  #allocation0 [shape = 'u32[]', space=smem, size = 0x4, offset = 0x4, fixed_abs, tag = 'smem constant byte address 0x4 - core index']
  #allocation1 [shape = 'u32[144,128]{1,0:T(1,128)}', space=vmem, size = 0x12000, scoped, tag = 'internal scratch']
  #allocation2 [shape = 'f32[32,32]{1,0:T(8,128)}', space=vmem, size = 0x4000, scoped, tag = 'scratch operand']
  %s0 = inlined_call_operand.hbm [shape: f32[32,32], index: 0, kind: input, shape index: {}]
  %s1 = inlined_call_operand.hbm [shape: f32[32,32], index: 1, kind: input, shape index: {}]
  %s2 = inlined_call_operand.hbm [shape: f32[32,32], index: 2, kind: output, shape index: {}]
  %s3 = sld [smem:[#allocation0]]
  $region34: #{tpu_custom_call.1} parent=0
    _
  %s5 = ssub.s32 1, %s3
  %s6 = scalar_select 0, %s5, %s3
  $region1: #{tpu_custom_call.1} parent=0
    #allocation3 [shape = 'u8[16384]{0}', space=vmem, size = 0x4000, scoped, tag = 'input window, operand 0, single buffered']
    #allocation4 [shape = 's32[1]{0}', space=sflag, size = 0x4, scoped, tag = 'scoped memory for tpu_custom_call.1']
    #allocation5 [shape = 's32[1]{0}', space=sflag, size = 0x4, scoped, tag = 'scoped memory for tpu_custom_call.1']
    #allocation6 [shape = 'u8[16384]{0}', space=vmem, size = 0x4000, scoped, tag = 'input window, operand 1, single buffered']
    #allocation7 [shape = 's32[1]{0}', space=sflag, size = 0x4, scoped, tag = 'scoped memory for tpu_custom_call.1']
    #allocation8 [shape = 'u8[16384]{0}', space=vmem, size = 0x4000, scoped, tag = 'output window, operand 0, single buffered']
    %7 = vsyncpa [#allocation4], 0
    %8 = vsyncpa [#allocation7], 0
    %9 = vsyncpa [#allocation5], 0
    // Predicated region
    $region2: #{tpu_custom_call.1} parent=1 // pred_check
      _
    $region3: #{tpu_custom_call.1} parent=1 // pred_check_branch
      %11 = sbr.rel (0) target = $region5
    $region4: #{tpu_custom_call.1} parent=1 // pred_region
      %s13 = ssub.s32 512, 512
      %14 = vsyncadd [#allocation4], %s13
      %s15 = sshll.u32 [#allocation3], 4
      %s16 = int_to_ptr.vmem [resolvable:$true] %s15
      %21 = dma.hbm_to_vmem [thread:$0]  %s0, 512, %s16, [#allocation4], 128, 128, 8
    $region5: #{tpu_custom_call.1} parent=1 // pred_fallthru
      _
    // Predicated region
    $region6: #{tpu_custom_call.1} parent=1 // pred_check
      _
    $region7: #{tpu_custom_call.1} parent=1 // pred_check_branch
      %23 = sbr.rel (0) target = $region9
    $region8: #{tpu_custom_call.1} parent=1 // pred_region
      %s25 = ssub.s32 512, 512
      %26 = vsyncadd [#allocation7], %s25
      %s27 = sshll.u32 [#allocation6], 4
      %s28 = int_to_ptr.vmem [resolvable:$true] %s27
      %33 = dma.hbm_to_vmem [thread:$0]  %s1, 512, %s28, [#allocation7], 128, 128, 8
    $region9: #{tpu_custom_call.1} parent=1 // pred_fallthru
      _
    // Predicated region
    $region10: #{tpu_custom_call.1} parent=1 // pred_check
      _
    $region11: #{tpu_custom_call.1} parent=1 // pred_check_branch
      %35 = sbr.rel (0) target = $region13
    $region12: #{tpu_custom_call.1} parent=1 // pred_region
      %36 = dma.done [#allocation4], 512
    $region13: #{tpu_custom_call.1} parent=1 // pred_fallthru
      _
    // Predicated region
    $region14: #{tpu_custom_call.1} parent=1 // pred_check
      _
    $region15: #{tpu_custom_call.1} parent=1 // pred_check_branch
      %38 = sbr.rel (0) target = $region17
    $region16: #{tpu_custom_call.1} parent=1 // pred_region
      %39 = dma.done [#allocation7], 512
    $region17: #{tpu_custom_call.1} parent=1 // pred_fallthru
      _
    %p40 = scmp.eq.s32.totalorder 0, 0
    // Predicated region
    $region18: #{tpu_custom_call.1} parent=1 // pred_check
      %p41 = pneg %p40
    $region19: #{tpu_custom_call.1} parent=1 // pred_check_branch
      %43 = sbr.rel (%p41) target = $region21
    $region20: #{tpu_custom_call.1} parent=1 // pred_region
      %vm44 = vcmask 261120
      %45 = vst.msk [vmem:[#allocation2] sm:$0xff] %vm44, 0.0
      %46 = vst.msk [vmem:[#allocation2 + $0x8] sm:$0xff] %vm44, 0.0
      %47 = vst.msk [vmem:[#allocation2 + $0x10] sm:$0xff] %vm44, 0.0
      %48 = vst.msk [vmem:[#allocation2 + $0x18] sm:$0xff] %vm44, 0.0
    $region21: #{tpu_custom_call.1} parent=1 // pred_fallthru
      _
    %v49 = vld [vmem:[#allocation2] sm:$0xff]
    %v50 = vld [vmem:[#allocation2 + $0x8] sm:$0xff]
    %v51 = vld [vmem:[#allocation2 + $0x10] sm:$0xff]
    %v52 = vld [vmem:[#allocation2 + $0x18] sm:$0xff]
    %v53 = vld [vmem:[#allocation3] sm:$0xff]
    %v54 = vld [vmem:[#allocation3 + $0x8] sm:$0xff]
    %v55 = vld [vmem:[#allocation3 + $0x10] sm:$0xff]
    %v56 = vld [vmem:[#allocation3 + $0x18] sm:$0xff]
    %v57 = vld [vmem:[#allocation6] sm:$0xff]
    %v58 = vld [vmem:[#allocation6 + $0x8] sm:$0xff]
    %v59 = vld [vmem:[#allocation6 + $0x10] sm:$0xff]
    %v60 = vld [vmem:[#allocation6 + $0x18] sm:$0xff]
    %vm61 = vcmask 261120
    %v63 = vsel %vm61, %v53, 0
    %v66 = vsel %vm61, %v54, 0
    %v69 = vsel %vm61, %v55, 0
    %v72 = vsel %vm61, %v56, 0
    %74 = vmatprep.subr.mxu0 0.0
    %75 = vmatpush1.msra.mxu0 %v57
    %76 = vmatprep.subr.mxu0 0.0
    %77 = vmatpush1.msra.mxu0 %v58
    %78 = vmatprep.subr.mxu0 0.0
    %79 = vmatpush1.msra.mxu0 %v59
    %80 = vmatprep.subr.mxu0 0.0
    %81 = vmatpush1.msra.mxu0 %v60
    %82 = vmatprep.subr.mxu0 0.0
    %83 = vmatpush1.msra.mxu0 0.0
    %84 = vmatprep.subr.mxu0 0.0
    %85 = vmatpush1.msra.mxu0 0.0
    %86 = vmatprep.subr.mxu0 0.0
    %87 = vmatpush1.msra.mxu0 0.0
    %88 = vmatprep.subr.mxu0 0.0
    %89 = vmatpush1.msra.mxu0 0.0
    %90 = vmatprep.subr.mxu0 0.0
    %91 = vmatpush1.msra.mxu0 0.0
    %92 = vmatprep.subr.mxu0 0.0
    %93 = vmatpush1.msra.mxu0 0.0
    %94 = vmatprep.subr.mxu0 0.0
    %95 = vmatpush1.msra.mxu0 0.0
    %96 = vmatprep.subr.mxu0 0.0
    %97 = vmatpush1.msra.mxu0 0.0
    %98 = vmatprep.subr.mxu0 0.0
    %99 = vmatpush1.msra.mxu0 0.0
    %100 = vmatprep.subr.mxu0 0.0
    %101 = vmatpush1.msra.mxu0 0.0
    %102 = vmatprep.subr.mxu0 0.0
    %103 = vmatpush1.msra.mxu0 0.0
    %104 = vmatprep.subr.mxu0 0.0
    %105 = vmatpush1.msra.mxu0 0.0
    %106 = vmatprep.subr.mxu0 0.0
    %107 = vmatpush1.msra.mxu0 0.0
    %108 = vmatprep.subr.mxu0 0.0
    %109 = vmatpush1.msra.mxu0 0.0
    %110 = vmatprep.subr.mxu0 0.0
    %111 = vmatpush1.msra.mxu0 0.0
    %112 = vmatprep.subr.mxu0 0.0
    %113 = vmatpush1.msra.mxu0 0.0
    %114 = vmatprep.subr.mxu0 0.0
    %115 = vmatpush1.msra.mxu0 0.0
    %116 = vmatprep.subr.mxu0 0.0
    %117 = vmatpush1.msra.mxu0 0.0
    %118 = vmatprep.subr.mxu0 0.0
    %119 = vmatpush1.msra.mxu0 0.0
    %120 = vmatprep.subr.mxu0 0.0
    %121 = vmatpush1.msra.mxu0 0.0
    %122 = vmatprep.subr.mxu0 0.0
    %123 = vmatpush1.msra.mxu0 0.0
    %124 = vmatprep.subr.mxu0 0.0
    %125 = vmatpush1.msra.mxu0 0.0
    %126 = vmatprep.subr.mxu0 0.0
    %127 = vmatpush1.msra.mxu0 0.0
    %128 = vmatprep.subr.mxu0 0.0
    %129 = vmatpush1.msra.mxu0 0.0
    %130 = vmatprep.subr.mxu0 0.0
    %131 = vmatpush1.msra.mxu0 0.0
    %132 = vmatprep.subr.mxu0 0.0
    %133 = vmatpush1.msra.mxu0 0.0
    %134 = vmatprep.subr.mxu0 0.0
    %135 = vmatpush1.msra.mxu0 0.0
    %136 = vmatprep.subr.mxu0 0.0
    %137 = vmatpush1.msra.mxu0 0.0
    %138 = vmatprep.mubr.f32.mxu0 0.0
    %139 = vmatmul.mubr.f32.gmra.mrb[0].mxu0 %v63
    %v140 = vpop.f32.mrb[0].mxu0
    %v141 = vadd.f32 0.0, %v140
    %v142 = vpop.f32.mrb[0].mxu0
    %143 = vmatprep.mubr.f32.mxu0 0.0
    %144 = vmatmul.mubr.f32.gmra.mrb[0].mxu0 %v66
    %v145 = vpop.f32.mrb[0].mxu0
    %v146 = vadd.f32 0.0, %v145
    %v147 = vpop.f32.mrb[0].mxu0
    %148 = vmatprep.mubr.f32.mxu0 0.0
    %149 = vmatmul.mubr.f32.gmra.mrb[0].mxu0 %v69
    %v150 = vpop.f32.mrb[0].mxu0
    %v151 = vadd.f32 0.0, %v150
    %v152 = vpop.f32.mrb[0].mxu0
    %153 = vmatprep.mubr.f32.mxu0 0.0
    %154 = vmatmul.mubr.f32.gmra.mrb[0].mxu0 %v72
    %v155 = vpop.f32.mrb[0].mxu0
    %v156 = vadd.f32 0.0, %v155
    %v157 = vpop.f32.mrb[0].mxu0
    %158 = vdwg.mxu0
    %v159 = vadd.f32 %v49, %v141
    %v160 = vadd.f32 %v50, %v146
    %v161 = vadd.f32 %v51, %v151
    %v162 = vadd.f32 %v52, %v156
    %163 = vst.msk [vmem:[#allocation2] sm:$0xff] %vm61, %v159
    %164 = vst.msk [vmem:[#allocation2 + $0x8] sm:$0xff] %vm61, %v160
    %165 = vst.msk [vmem:[#allocation2 + $0x10] sm:$0xff] %vm61, %v161
    %166 = vst.msk [vmem:[#allocation2 + $0x18] sm:$0xff] %vm61, %v162
    // Predicated region
    $region22: #{tpu_custom_call.1} parent=1 // pred_check
      %p167 = pneg %p40
    $region23: #{tpu_custom_call.1} parent=1 // pred_check_branch
      %169 = sbr.rel (%p167) target = $region25
    $region24: #{tpu_custom_call.1} parent=1 // pred_region
      %v170 = vld [vmem:[#allocation2] sm:$0xff]
      %v171 = vld [vmem:[#allocation2 + $0x8] sm:$0xff]
      %v172 = vld [vmem:[#allocation2 + $0x10] sm:$0xff]
      %v173 = vld [vmem:[#allocation2 + $0x18] sm:$0xff]
      %174 = vst.msk [vmem:[#allocation8] sm:$0xff] %vm61, %v170
      %175 = vst.msk [vmem:[#allocation8 + $0x8] sm:$0xff] %vm61, %v171
      %176 = vst.msk [vmem:[#allocation8 + $0x10] sm:$0xff] %vm61, %v172
      %177 = vst.msk [vmem:[#allocation8 + $0x18] sm:$0xff] %vm61, %v173
    $region25: #{tpu_custom_call.1} parent=1 // pred_fallthru
      _
    // Predicated region
    $region26: #{tpu_custom_call.1} parent=1 // pred_check
      _
    $region27: #{tpu_custom_call.1} parent=1 // pred_check_branch
      %179 = sbr.rel (0) target = $region29
    $region28: #{tpu_custom_call.1} parent=1 // pred_region
      %s181 = ssub.s32 512, 512
      %182 = vsyncadd [#allocation5], %s181
      %s183 = sshll.u32 [#allocation8], 4
      %s184 = int_to_ptr.vmem [resolvable:$true] %s183
      %189 = dma.vmem_to_hbm [thread:$0]  %s184, 512, %s2, [#allocation5], 128, 128, 8
    $region29: #{tpu_custom_call.1} parent=1 // pred_fallthru
      _
    // Predicated region
    $region30: #{tpu_custom_call.1} parent=1 // pred_check
      _
    $region31: #{tpu_custom_call.1} parent=1 // pred_check_branch
      %191 = sbr.rel (0) target = $region33
    $region32: #{tpu_custom_call.1} parent=1 // pred_region
      %192 = dma.done [#allocation5], 512
    $region33: #{tpu_custom_call.1} parent=1 // pred_fallthru
      _
    %193 = vsyncpa [#allocation4], 1
    %194 = vsyncpa [#allocation7], 1
    %195 = vsyncpa [#allocation5], 1

</llo_original>
